<compile_context>
chip_gen: v6e
topology: v6e:2x2x1
jax: 0.10.0
libtpu: 0.0.40
codegen_flags: <defaults>
</compile_context>

<pallas_src>
import functools

import jax
import jax.numpy as jnp
from jax.experimental import pallas as pl
from jax.experimental.pallas import tpu as pltpu


def _cdiv(a, b):
    return -(-a // b)


def _round_up(x, m):
    return (x + m - 1) // m * m


def reward_predictor_kernel(obs_ref, act_ref,
                            w1_ref, bias_ref, w2h_ref, w3e_ref, b3_ref,
                            out_ref):
    """Transposed layout: features on sublanes, batch (TM) on lanes.

    obs_ref : (obs_dim, TM)      bf16   obs tile (batch on lanes)
    act_ref : (1, TM)            int32  action index per column
    w1_ref  : (H, obs_dim + A)   bf16   [We@W1e | W1a]^T   (encoder folded, layer-1 fused)
    bias_ref: (H, 2)             f32    col 0 = (be@W1e + b1)^T, col 1 = 0.5*b2^T
    w2h_ref : (H, H)             bf16   (0.5*W2)^T          (tanh pre-scale folded)
    w3e_ref : (1, H)             bf16   (0.5 * W3@wts^T)^T  (layer 3 + weights + tanh post-scale folded)
    b3_ref  : (1, 1)             f32    SMEM scalar: sum(b3*wts) + 0.5*sum(W3@wts^T)
    out_ref : (1, TM)            f32    lane-dense output row
    """
    obs_dim = obs_ref.shape[0]
    a_dim = w1_ref.shape[1] - obs_dim
    tm = act_ref.shape[1]

    # One-hot built in-kernel from the int32 index (cheap VPU compare); avoids any
    # (B, action_dim) f32 one-hot HBM traffic.
    onehot = (jax.lax.broadcasted_iota(jnp.int32, (a_dim, tm), 0)
              == act_ref[...]).astype(jnp.bfloat16)                       # (A, TM)

    # Fused layer-1 RHS: [obs ; onehot] along sublanes -> single MXU pass.
    rhs = jnp.concatenate([obs_ref[...], onehot], axis=0)                 # (obs_dim+A, TM)

    # layer 1 (encoder folded in) + ReLU; f32 accumulation, bias add in f32,
    # result written once as bf16 (halves the dominant intermediate).
    acc1 = jnp.dot(w1_ref[...], rhs, preferred_element_type=jnp.float32)  # (H, TM) f32
    h1 = jnp.maximum(acc1 + bias_ref[:, 0:1], 0.0).astype(jnp.bfloat16)   # (H, TM) bf16

    # layer 2 + sigmoid, expressed as a single transcendental:
    #   sigmoid(x) = 0.5*tanh(x/2) + 0.5 ; the 0.5 pre-scale lives in w2h/bias col 1,
    #   the 0.5*(.)+0.5 post-scale is folded into w3e / b3.  tanh kept in f32
    #   (portable: v5e has no bf16 EUP); cast to bf16 only for the layer-3 MXU input.
    z = (jnp.dot(w2h_ref[...], h1, preferred_element_type=jnp.float32)
         + bias_ref[:, 1:2])                                              # (H, TM) f32
    t = jnp.tanh(z).astype(jnp.bfloat16)                                  # (H, TM) bf16

    # folded layer 3 + weighted sum + sigmoid affine -> single lane-dense (1, TM) store.
    out_ref[...] = (jnp.dot(w3e_ref[...], t, preferred_element_type=jnp.float32)
                    + b3_ref[0, 0])


def prepare_kernel_params(params):
    """Fold encoder->layer1, layer3->weighted-sum, and the sigmoid affine; pack biases."""
    input_dim = params["input_dim"]
    w1e = params["w1"][:input_dim, :]                  # (input_dim, H)
    w1a = params["w1"][input_dim:, :]                  # (A, H)

    wf = params["we"] @ w1e                            # (obs_dim, H)  encoder folded in
    bf = params["be"] @ w1e + params["b1"]             # (1, H)

    w3v = params["w3"] @ params["wts"].T               # (H, 1)        layer 3 . weights
    b3e = jnp.sum(params["b3"] * params["wts"]) + 0.5 * jnp.sum(w3v)

    w1_fused = jnp.concatenate([wf, w1a], axis=0).T    # (H, obs_dim + A)
    bias_pack = jnp.concatenate([bf.T, 0.5 * params["b2"].T], axis=1)   # (H, 2)

    return {
        "w1_t":  w1_fused.astype(jnp.bfloat16),               # (H, obs_dim+A) bf16
        "bias":  bias_pack.astype(jnp.float32),               # (H, 2)         f32
        "w2h_t": (0.5 * params["w2"]).T.astype(jnp.bfloat16), # (H, H)         bf16
        "w3e_t": (0.5 * w3v).T.astype(jnp.bfloat16),          # (1, H)         bf16
        "b3e":   b3e.reshape(1, 1).astype(jnp.float32),       # (1, 1)  -> SMEM
    }


@functools.partial(jax.jit, static_argnames=("block_b",))
def reward_predictor_forward(obs, action, kparams, *, block_b=8192):
    """obs: (B, obs_dim) f32, action: (B,) int32 in [0, action_dim). Returns (B,) f32.

    block_b: max batch tile (lanes).  8192 amortizes the ~0.35 us/step grid overhead;
    with the explicit vmem_limit below it fits v5e/v6e (128 MiB VMEM) and v7x (64 MiB).
    """
    assert block_b % 128 == 0, "block_b must be a multiple of 128 lanes"
    B, obs_dim = obs.shape
    hidden = kparams["w2h_t"].shape[0]

    # Balanced tile selection: pick the tile COUNT first, then size tiles so padding
    # stays under one 128-lane block per tile.  Force >=2 tiles when the batch is big
    # enough so v7x's two TensorCores (grid axis is "parallel") both get work.
    n_tiles = _cdiv(B, block_b)
    if n_tiles == 1 and B > 128:
        n_tiles = 2
    tm = _round_up(_cdiv(B, n_tiles), 128)
    b_pad = n_tiles * tm

    # Transposed, lane-major inputs: batch on lanes.  The transpose + bf16 cast + pad
    # is one copy pass and keeps the obs tile compact ((obs_dim, TM) bf16) instead of
    # the lane-padded (TM, obs_dim) form (~8x VMEM/DMA for obs_dim=16).
    obs_t = jnp.pad(obs.T.astype(jnp.bfloat16), ((0, 0), (0, b_pad - B)))
    act = jnp.pad(action.astype(jnp.int32).reshape(1, B), ((0, 0), (0, b_pad - B)))

    # VMEM budget: ~(f32 + bf16) x 2 live (H, TM) intermediates + buffers + slack.
    vmem_limit = int(min(100 << 20, 16 * hidden * tm + (16 << 20)))

    batch_spec = lambda shape: pl.BlockSpec(shape, lambda i: (0, i))
    const_spec = lambda arr: pl.BlockSpec(arr.shape, lambda i: (0, 0))   # VMEM-resident

    out = pl.pallas_call(
        reward_predictor_kernel,
        out_shape=jax.ShapeDtypeStruct((1, b_pad), jnp.float32),
        grid=(b_pad // tm,),
        in_specs=[
            batch_spec((obs_dim, tm)),        # obs (transposed)
            batch_spec((1, tm)),              # action indices
            const_spec(kparams["w1_t"]),
            const_spec(kparams["bias"]),
            const_spec(kparams["w2h_t"]),
            const_spec(kparams["w3e_t"]),
            pl.BlockSpec(memory_space=pltpu.MemorySpace.SMEM),   # b3 scalar
        ],
        out_specs=batch_spec((1, tm)),
        compiler_params=pltpu.CompilerParams(
            dimension_semantics=("parallel",),     # shard batch tiles across TCs (v7x)
            vmem_limit_bytes=vmem_limit),
    )(obs_t, act,
      kparams["w1_t"], kparams["bias"], kparams["w2h_t"],
      kparams["w3e_t"], kparams["b3e"])

    return out[0, :B]


def init_params(key, obs_dim, input_dim, action_dim, hidden_dim):
    """PyTorch-style master parameters (f32), nn.Linear default init."""
    ks = jax.random.split(key, 4)

    def lin(k, fan_in, fan_out):
        bound = 1.0 / (fan_in ** 0.5)
        kw, kb = jax.random.split(k)
        w = jax.random.uniform(kw, (fan_in, fan_out), jnp.float32, -bound, bound)
        b = jax.random.uniform(kb, (1, fan_out), jnp.float32, -bound, bound)
        return w, b

    we, be = lin(ks[0], obs_dim, input_dim)                      # encoder stand-in
    w1, b1 = lin(ks[1], input_dim + action_dim, hidden_dim)      # reward_mlp[0]
    w2, b2 = lin(ks[2], hidden_dim, hidden_dim)                  # reward_mlp[2]
    w3, b3 = lin(ks[3], hidden_dim, 3)                           # reward_mlp[4]
    return {
        "we": we, "be": be, "w1": w1, "b1": b1,
        "w2": w2, "b2": b2, "w3": w3, "b3": b3,
        "wts": jnp.array([[-1.0, -0.01, 1.0]], dtype=jnp.float32),
        "input_dim": input_dim,
    }


def reference_forward(obs, action, params):
    """Plain-JAX f32 reference matching the PyTorch module's forward."""
    input_dim = params["input_dim"]
    w1e = params["w1"][:input_dim, :]
    w1a = params["w1"][input_dim:, :]
    enc = obs @ params["we"] + params["be"]
    oh = jax.nn.one_hot(action, w1a.shape[0], dtype=jnp.float32)
    h1 = jnp.maximum(enc @ w1e + oh @ w1a + params["b1"], 0.0)
    h2 = jax.nn.sigmoid(h1 @ params["w2"] + params["b2"])
    h3 = h2 @ params["w3"] + params["b3"]
    return jnp.sum(h3 * params["wts"], axis=-1)


if __name__ == "__main__":
    B, obs_dim = 8, 16
    input_dim, action_dim, hidden_dim = 10, 8, 128

    key = jax.random.PRNGKey(0)
    k_obs, k_act, k_par = jax.random.split(key, 3)

    obs = jax.random.normal(k_obs, (B, obs_dim), dtype=jnp.float32)
    action = jax.random.randint(k_act, (B,), 0, action_dim, dtype=jnp.int32)

    params = init_params(k_par, obs_dim, input_dim, action_dim, hidden_dim)
    kparams = prepare_kernel_params(params)

    out = reward_predictor_forward(obs, action, kparams)
    out = jax.block_until_ready(out)

    ref = reference_forward(obs, action, params)
    assert out.shape == (B,)
    # bf16 matmul inputs with f32 accumulation vs. a pure-f32 reference.
    assert jnp.allclose(out, ref, rtol=2e-2, atol=2e-2), (out, ref)

    print("KERNEL_OK")
</pallas_src>

<mosaic_0001>
module attributes {stable_mosaic.version = 11 : i64} {
  func.func @reward_predictor_kernel(%arg0: i32, %arg1: memref<16x128xbf16, #tpu.memory_space<vmem>>, %arg2: memref<1x128xi32, #tpu.memory_space<vmem>>, %arg3: memref<128x24xbf16, #tpu.memory_space<vmem>>, %arg4: memref<128x2xf32, #tpu.memory_space<vmem>>, %arg5: memref<128x128xbf16, #tpu.memory_space<vmem>>, %arg6: memref<1x128xbf16, #tpu.memory_space<vmem>>, %arg7: memref<1x1xf32, #tpu.memory_space<smem>>, %arg8: memref<1x128xf32, #tpu.memory_space<vmem>>) attributes {dimension_semantics = [#tpu.dimension_semantics<parallel>], iteration_bounds = array<i64: 1>, scalar_prefetch = 0 : i64, scratch_operands = 0 : i64, tpu.core_type = #tpu.core_type<tc>, window_params = [{transform_indices = @transform_0, window_bounds = array<i64: 16, 128>}, {transform_indices = @transform_1, window_bounds = array<i64: 1, 128>}, {pipeline_mode = #tpu.pipeline_mode<synchronous>, transform_indices = @transform_2, window_bounds = array<i64: 128, 24>}, {pipeline_mode = #tpu.pipeline_mode<synchronous>, transform_indices = @transform_3, window_bounds = array<i64: 128, 2>}, {pipeline_mode = #tpu.pipeline_mode<synchronous>, transform_indices = @transform_4, window_bounds = array<i64: 128, 128>}, {pipeline_mode = #tpu.pipeline_mode<synchronous>, transform_indices = @transform_5, window_bounds = array<i64: 1, 128>}, {transform_indices = @transform_6, window_bounds = array<i64: 1, 1>}, {transform_indices = @transform_7, window_bounds = array<i64: 1, 128>}]} {
    %0 = tpu.iota {dimensions = array<i32: 0>} : vector<8x128xi32>
    %c0 = arith.constant 0 : index
    %c0_0 = arith.constant 0 : index
    %1 = vector.load %arg2[%c0, %c0_0] : memref<1x128xi32, #tpu.memory_space<vmem>>, vector<1x128xi32>
    %2 = vector.broadcast %1 : vector<1x128xi32> to vector<8x128xi32>
    %3 = arith.cmpi eq, %0, %2 : vector<8x128xi32>
    %4 = arith.extui %3 : vector<8x128xi1> to vector<8x128xi32>
    %5 = arith.sitofp %4 : vector<8x128xi32> to vector<8x128xf32>
    %6 = arith.truncf %5 : vector<8x128xf32> to vector<8x128xbf16>
    %c0_1 = arith.constant 0 : index
    %c0_2 = arith.constant 0 : index
    %7 = vector.load %arg1[%c0_1, %c0_2] : memref<16x128xbf16, #tpu.memory_space<vmem>>, vector<16x128xbf16>
    %8 = tpu.concatenate %7, %6 in 0 : vector<16x128xbf16>, vector<8x128xbf16> -> vector<24x128xbf16>
    %c0_3 = arith.constant 0 : index
    %c0_4 = arith.constant 0 : index
    %9 = vector.load %arg3[%c0_3, %c0_4] : memref<128x24xbf16, #tpu.memory_space<vmem>>, vector<128x24xbf16>
    %cst = arith.constant dense<0.000000e+00> : vector<128x128xf32>
    %10 = tpu.matmul %9, %8, %cst {dimension_numbers = #tpu.dot_dimension_numbers<[1], [0], [0], [1], [0, 0, 1, 1], [], []>} : vector<128x24xbf16>, vector<24x128xbf16>, vector<128x128xf32> -> vector<128x128xf32>
    %c0_5 = arith.constant 0 : index
    %c0_6 = arith.constant 0 : index
    %11 = vector.load %arg4[%c0_5, %c0_6] : memref<128x2xf32, #tpu.memory_space<vmem>>, vector<128x1xf32>
    %12 = vector.broadcast %11 : vector<128x1xf32> to vector<128x128xf32>
    %13 = arith.addf %10, %12 : vector<128x128xf32>
    %cst_7 = arith.constant 0.000000e+00 : f32
    %14 = vector.broadcast %cst_7 : f32 to vector<128x128xf32>
    %15 = arith.maximumf %13, %14 : vector<128x128xf32>
    %16 = arith.truncf %15 : vector<128x128xf32> to vector<128x128xbf16>
    %c0_8 = arith.constant 0 : index
    %c0_9 = arith.constant 0 : index
    %17 = vector.load %arg5[%c0_8, %c0_9] : memref<128x128xbf16, #tpu.memory_space<vmem>>, vector<128x128xbf16>
    %cst_10 = arith.constant dense<0.000000e+00> : vector<128x128xf32>
    %18 = tpu.matmul %17, %16, %cst_10 {dimension_numbers = #tpu.dot_dimension_numbers<[1], [0], [0], [1], [0, 0, 1, 1], [], []>} : vector<128x128xbf16>, vector<128x128xbf16>, vector<128x128xf32> -> vector<128x128xf32>
    %c0_11 = arith.constant 0 : index
    %c1 = arith.constant 1 : index
    %19 = vector.load %arg4[%c0_11, %c1] : memref<128x2xf32, #tpu.memory_space<vmem>>, vector<128x1xf32>
    %20 = vector.broadcast %19 : vector<128x1xf32> to vector<128x128xf32>
    %21 = arith.addf %18, %20 : vector<128x128xf32>
    %22 = math.tanh %21 : vector<128x128xf32>
    %23 = arith.truncf %22 : vector<128x128xf32> to vector<128x128xbf16>
    %c0_12 = arith.constant 0 : index
    %c0_13 = arith.constant 0 : index
    %24 = vector.load %arg6[%c0_12, %c0_13] : memref<1x128xbf16, #tpu.memory_space<vmem>>, vector<1x128xbf16>
    %cst_14 = arith.constant dense<0.000000e+00> : vector<1x128xf32>
    %25 = tpu.matmul %24, %23, %cst_14 {dimension_numbers = #tpu.dot_dimension_numbers<[1], [0], [0], [1], [0, 0, 1, 1], [], []>} : vector<1x128xbf16>, vector<128x128xbf16>, vector<1x128xf32> -> vector<1x128xf32>
    %c0_15 = arith.constant 0 : index
    %c0_16 = arith.constant 0 : index
    %26 = memref.load %arg7[%c0_15, %c0_16] : memref<1x1xf32, #tpu.memory_space<smem>>
    %27 = vector.broadcast %26 : f32 to vector<1x128xf32>
    %28 = arith.addf %25, %27 : vector<1x128xf32>
    %c0_17 = arith.constant 0 : index
    %c0_18 = arith.constant 0 : index
    %29 = vector.load %arg8[%c0_17, %c0_18] : memref<1x128xf32, #tpu.memory_space<vmem>>, vector<1x128xf32>
    tpu.vector_store %arg8[%c0_17, %c0_18], %28 {strides = array<i32>} : memref<1x128xf32, #tpu.memory_space<vmem>>, vector<1x128xf32>,
    return
  }
  func.func @transform_0(%arg0: i32) -> (i32, i32) {
    %c0_i32 = arith.constant 0 : i32
    %c0_i32_0 = arith.constant 0 : i32
    return %c0_i32, %arg0 : i32, i32
  }
  func.func @transform_1(%arg0: i32) -> (i32, i32) {
    %c0_i32 = arith.constant 0 : i32
    %c0_i32_0 = arith.constant 0 : i32
    return %c0_i32, %arg0 : i32, i32
  }
  func.func @transform_2(%arg0: i32) -> (i32, i32) {
    %c0_i32 = arith.constant 0 : i32
    %c0_i32_0 = arith.constant 0 : i32
    %c0_i32_1 = arith.constant 0 : i32
    return %c0_i32, %c0_i32_0 : i32, i32
  }
  func.func @transform_3(%arg0: i32) -> (i32, i32) {
    %c0_i32 = arith.constant 0 : i32
    %c0_i32_0 = arith.constant 0 : i32
    %c0_i32_1 = arith.constant 0 : i32
    return %c0_i32, %c0_i32_0 : i32, i32
  }
  func.func @transform_4(%arg0: i32) -> (i32, i32) {
    %c0_i32 = arith.constant 0 : i32
    %c0_i32_0 = arith.constant 0 : i32
    %c0_i32_1 = arith.constant 0 : i32
    return %c0_i32, %c0_i32_0 : i32, i32
  }
  func.func @transform_5(%arg0: i32) -> (i32, i32) {
    %c0_i32 = arith.constant 0 : i32
    %c0_i32_0 = arith.constant 0 : i32
    %c0_i32_1 = arith.constant 0 : i32
    return %c0_i32, %c0_i32_0 : i32, i32
  }
  func.func @transform_6(%arg0: i32) -> (i32, i32) {
    %c0_i32 = arith.constant 0 : i32
    %c0_i32_0 = arith.constant 0 : i32
    %c0_i32_1 = arith.constant 0 : i32
    return %c0_i32, %c0_i32_0 : i32, i32
  }
  func.func @transform_7(%arg0: i32) -> (i32, i32) {
    %c0_i32 = arith.constant 0 : i32
    %c0_i32_0 = arith.constant 0 : i32
    return %c0_i32, %arg0 : i32, i32
  }
}

</mosaic_0001>

<llo_original>
// kernel: reward_predictor_forward.1
$region0: #{reward_predictor_forward.1}
  #allocation0 [shape = 'u32[]', space=smem, size = 0x4, offset = 0x4, fixed_abs, tag = 'smem constant byte address 0x4 - core index']
  #allocation1 [shape = 'u32[144,128]{1,0:T(1,128)}', space=vmem, size = 0x12000, scoped, tag = 'internal scratch']
  #allocation2 [shape = 'f32[1,1]{1,0:T(1,128)S(6)}', space=smem, size = 0x200, scoped, tag = 'scoped memory for reward_predictor_forward.1']
  %s0 = inlined_call_operand.vmem [shape: bf16[16,128], index: 0, kind: input, shape index: {}]
  %s1 = inlined_call_operand.vmem [shape: s32[1,128], index: 1, kind: input, shape index: {}]
  %s2 = inlined_call_operand.vmem [shape: bf16[128,24], index: 2, kind: input, shape index: {}]
  %s3 = inlined_call_operand.vmem [shape: f32[128,2], index: 3, kind: input, shape index: {}]
  %s4 = inlined_call_operand.vmem [shape: bf16[128,128], index: 4, kind: input, shape index: {}]
  %s5 = inlined_call_operand.vmem [shape: bf16[1,128], index: 5, kind: input, shape index: {}]
  %s6 = inlined_call_operand.<no memory space> [shape: f32[1,1], index: 6, kind: input, shape index: {}]
  %s7 = inlined_call_operand.vmem [shape: f32[1,128], index: 7, kind: output, shape index: {}]
  %s8 = sld [smem:[#allocation0]]
  $region38: #{reward_predictor_forward.1} parent=0
    _
  %s10 = ssub.s32 1, %s8
  %s11 = scalar_select 0, %s10, %s8
  %12 = sst [smem:[#allocation2]] %s6
  // Predicated region
  $region2: #{reward_predictor_forward.1} parent=0 // pred_check
    _
  $region3: #{reward_predictor_forward.1} parent=0 // pred_check_branch
    %14 = sbr.rel (0) target = $region5
  $region4: #{reward_predictor_forward.1} parent=0 // pred_region
    _
  $region5: #{reward_predictor_forward.1} parent=0 // pred_fallthru
    _
  // Predicated region
  $region6: #{reward_predictor_forward.1} parent=0 // pred_check
    _
  $region7: #{reward_predictor_forward.1} parent=0 // pred_check_branch
    %16 = sbr.rel (0) target = $region9
  $region8: #{reward_predictor_forward.1} parent=0 // pred_region
    _
  $region9: #{reward_predictor_forward.1} parent=0 // pred_fallthru
    _
  // Predicated region
  $region10: #{reward_predictor_forward.1} parent=0 // pred_check
    _
  $region11: #{reward_predictor_forward.1} parent=0 // pred_check_branch
    %18 = sbr.rel (0) target = $region13
  $region12: #{reward_predictor_forward.1} parent=0 // pred_region
    _
  $region13: #{reward_predictor_forward.1} parent=0 // pred_fallthru
    _
  // Predicated region
  $region14: #{reward_predictor_forward.1} parent=0 // pred_check
    _
  $region15: #{reward_predictor_forward.1} parent=0 // pred_check_branch
    %20 = sbr.rel (0) target = $region17
  $region16: #{reward_predictor_forward.1} parent=0 // pred_region
    _
  $region17: #{reward_predictor_forward.1} parent=0 // pred_fallthru
    _
  // Predicated region
  $region18: #{reward_predictor_forward.1} parent=0 // pred_check
    _
  $region19: #{reward_predictor_forward.1} parent=0 // pred_check_branch
    %22 = sbr.rel (0) target = $region21
  $region20: #{reward_predictor_forward.1} parent=0 // pred_region
    _
  $region21: #{reward_predictor_forward.1} parent=0 // pred_fallthru
    _
  // Predicated region
  $region22: #{reward_predictor_forward.1} parent=0 // pred_check
    _
  $region23: #{reward_predictor_forward.1} parent=0 // pred_check_branch
    %24 = sbr.rel (0) target = $region25
  $region24: #{reward_predictor_forward.1} parent=0 // pred_region
    _
  $region25: #{reward_predictor_forward.1} parent=0 // pred_fallthru
    _
  // Predicated region
  $region26: #{reward_predictor_forward.1} parent=0 // pred_check
    _
  $region27: #{reward_predictor_forward.1} parent=0 // pred_check_branch
    %26 = sbr.rel (0) target = $region29
  $region28: #{reward_predictor_forward.1} parent=0 // pred_region
    _
  $region29: #{reward_predictor_forward.1} parent=0 // pred_fallthru
    _
  %v28 = vlaneseq
  %v29 = vshrl.u32 %v28, 7
  %v30 = vld [vmem:[%s1] sm:$0x1]
  %v31 = vlaneseq
  %v32 = vshrl.u32 %v31, 7
  %v33 = vsub.s32 0, %v32
  %v34 = vrot.slane %v30, %v33
  %vm35 = vcmp.eq.s32.totalorder %v29, %v34
  %v36 = vsel %vm35, 1, 0
  %v37 = vcvt.s32.f32 %v36
  %v38 = vpack.c.bf16 %v37, %v37
  %v39 = vld [vmem:[%s0] sm:$0xf]
  %v40 = vld [vmem:[%s0 + $0x4] sm:$0xf]
  %v43 = vunpack.c.l.b16 %v39
  %v44 = vunpack.c.l.b16 %v40
  %v45 = vpack.c.b16 %v44, %v43
  %v47 = vld [vmem:[%s2] sm:$0xf]
  %v48 = vld [vmem:[%s2 + $0x4] sm:$0xf]
  %v49 = vld [vmem:[%s2 + $0x8] sm:$0xf]
  %v50 = vld [vmem:[%s2 + $0xc] sm:$0xf]
  %v51 = vld [vmem:[%s2 + $0x10] sm:$0xf]
  %v52 = vld [vmem:[%s2 + $0x14] sm:$0xf]
  %v53 = vld [vmem:[%s2 + $0x18] sm:$0xf]
  %v54 = vld [vmem:[%s2 + $0x1c] sm:$0xf]
  %v55 = vld [vmem:[%s2 + $0x20] sm:$0xf]
  %v56 = vld [vmem:[%s2 + $0x24] sm:$0xf]
  %v57 = vld [vmem:[%s2 + $0x28] sm:$0xf]
  %v58 = vld [vmem:[%s2 + $0x2c] sm:$0xf]
  %v59 = vld [vmem:[%s2 + $0x30] sm:$0xf]
  %v60 = vld [vmem:[%s2 + $0x34] sm:$0xf]
  %v61 = vld [vmem:[%s2 + $0x38] sm:$0xf]
  %v62 = vld [vmem:[%s2 + $0x3c] sm:$0xf]
  %v63 = vld [vmem:[%s3] sm:$0xff]
  %v64 = vld [vmem:[%s3 + $0x8] sm:$0xff]
  %v65 = vld [vmem:[%s3 + $0x10] sm:$0xff]
  %v66 = vld [vmem:[%s3 + $0x18] sm:$0xff]
  %v67 = vld [vmem:[%s3 + $0x20] sm:$0xff]
  %v68 = vld [vmem:[%s3 + $0x28] sm:$0xff]
  %v69 = vld [vmem:[%s3 + $0x30] sm:$0xff]
  %v70 = vld [vmem:[%s3 + $0x38] sm:$0xff]
  %v71 = vld [vmem:[%s3 + $0x40] sm:$0xff]
  %v72 = vld [vmem:[%s3 + $0x48] sm:$0xff]
  %v73 = vld [vmem:[%s3 + $0x50] sm:$0xff]
  %v74 = vld [vmem:[%s3 + $0x58] sm:$0xff]
  %v75 = vld [vmem:[%s3 + $0x60] sm:$0xff]
  %v76 = vld [vmem:[%s3 + $0x68] sm:$0xff]
  %v77 = vld [vmem:[%s3 + $0x70] sm:$0xff]
  %v78 = vld [vmem:[%s3 + $0x78] sm:$0xff]
  %80 = vset.pattern.permute.xlu0 0
  %81 = vperm.xlu0 %80, %v63
  %v82 = vpop.permute.xlu0 %81
  %85 = vset.pattern.permute.xlu0 0
  %86 = vperm.xlu0 %85, %v64
  %v87 = vpop.permute.xlu0 %86
  %90 = vset.pattern.permute.xlu0 0
  %91 = vperm.xlu0 %90, %v65
  %v92 = vpop.permute.xlu0 %91
  %95 = vset.pattern.permute.xlu0 0
  %96 = vperm.xlu0 %95, %v66
  %v97 = vpop.permute.xlu0 %96
  %100 = vset.pattern.permute.xlu0 0
  %101 = vperm.xlu0 %100, %v67
  %v102 = vpop.permute.xlu0 %101
  %105 = vset.pattern.permute.xlu0 0
  %106 = vperm.xlu0 %105, %v68
  %v107 = vpop.permute.xlu0 %106
  %110 = vset.pattern.permute.xlu0 0
  %111 = vperm.xlu0 %110, %v69
  %v112 = vpop.permute.xlu0 %111
  %115 = vset.pattern.permute.xlu0 0
  %116 = vperm.xlu0 %115, %v70
  %v117 = vpop.permute.xlu0 %116
  %120 = vset.pattern.permute.xlu0 0
  %121 = vperm.xlu0 %120, %v71
  %v122 = vpop.permute.xlu0 %121
  %125 = vset.pattern.permute.xlu0 0
  %126 = vperm.xlu0 %125, %v72
  %v127 = vpop.permute.xlu0 %126
  %130 = vset.pattern.permute.xlu0 0
  %131 = vperm.xlu0 %130, %v73
  %v132 = vpop.permute.xlu0 %131
  %135 = vset.pattern.permute.xlu0 0
  %136 = vperm.xlu0 %135, %v74
  %v137 = vpop.permute.xlu0 %136
  %140 = vset.pattern.permute.xlu0 0
  %141 = vperm.xlu0 %140, %v75
  %v142 = vpop.permute.xlu0 %141
  %145 = vset.pattern.permute.xlu0 0
  %146 = vperm.xlu0 %145, %v76
  %v147 = vpop.permute.xlu0 %146
  %150 = vset.pattern.permute.xlu0 0
  %151 = vperm.xlu0 %150, %v77
  %v152 = vpop.permute.xlu0 %151
  %155 = vset.pattern.permute.xlu0 0
  %156 = vperm.xlu0 %155, %v78
  %v157 = vpop.permute.xlu0 %156
  %v175 = vunpack.c.l.b16 %v47
  %v176 = vunpack.c.l.b16 %v48
  %v177 = vunpack.c.l.b16 %v49
  %v178 = vunpack.c.l.b16 %v50
  %v179 = vunpack.c.l.b16 %v51
  %v180 = vunpack.c.l.b16 %v52
  %v181 = vunpack.c.l.b16 %v53
  %v182 = vunpack.c.l.b16 %v54
  %v183 = vunpack.c.l.b16 %v55
  %v184 = vunpack.c.l.b16 %v56
  %v185 = vunpack.c.l.b16 %v57
  %v186 = vunpack.c.l.b16 %v58
  %v187 = vunpack.c.l.b16 %v59
  %v188 = vunpack.c.l.b16 %v60
  %v189 = vunpack.c.l.b16 %v61
  %v190 = vunpack.c.l.b16 %v62
  %v191 = vpack.c.b16 %v176, %v175
  %v192 = vpack.c.b16 %v178, %v177
  %v193 = vpack.c.b16 %v180, %v179
  %v194 = vpack.c.b16 %v182, %v181
  %v195 = vpack.c.b16 %v184, %v183
  %v196 = vpack.c.b16 %v186, %v185
  %v197 = vpack.c.b16 %v188, %v187
  %v198 = vpack.c.b16 %v190, %v189
  %vm199 = vcmask 195584
  %v201 = vsel %vm199, %v191, 0
  %v204 = vsel %vm199, %v192, 0
  %v207 = vsel %vm199, %v193, 0
  %v210 = vsel %vm199, %v194, 0
  %v213 = vsel %vm199, %v195, 0
  %v216 = vsel %vm199, %v196, 0
  %v219 = vsel %vm199, %v197, 0
  %v222 = vsel %vm199, %v198, 0
  %vm224 = vcmask 1043456
  %v226 = vsel %vm224, %v38, 0
  %228 = vmatprep.subr.bf16.mxu0 0
  %229 = vmatpush1.bf16.msra.mxu0 0
  %230 = vmatprep.subr.bf16.mxu0 0
  %231 = vmatpush1.bf16.msra.mxu0 0
  %232 = vmatprep.subr.bf16.mxu0 0
  %233 = vmatpush1.bf16.msra.mxu0 0
  %234 = vmatprep.subr.bf16.mxu0 0
  %235 = vmatpush1.bf16.msra.mxu0 0
  %236 = vmatprep.subr.bf16.mxu0 0
  %237 = vmatpush1.bf16.msra.mxu0 0
  %238 = vmatprep.subr.bf16.mxu0 0
  %239 = vmatpush1.bf16.msra.mxu0 0
  %240 = vmatprep.subr.bf16.mxu0 0
  %241 = vmatpush1.bf16.msra.mxu0 %v226
  %242 = vmatprep.subr.bf16.mxu0 0
  %243 = vmatpush1.bf16.msra.mxu0 %v45
  %244 = vmatprep.subr.bf16.mxu0 0
  %245 = vmatpush2.bf16.msra.mxu0 0
  %246 = vmatprep.subr.bf16.mxu0 0
  %247 = vmatpush2.bf16.msra.mxu0 0
  %248 = vmatprep.subr.bf16.mxu0 0
  %249 = vmatpush2.bf16.msra.mxu0 0
  %250 = vmatprep.subr.bf16.mxu0 0
  %251 = vmatpush2.bf16.msra.mxu0 0
  %252 = vmatprep.subr.bf16.mxu0 0
  %253 = vmatpush2.bf16.msra.mxu0 0
  %254 = vmatprep.subr.bf16.mxu0 0
  %255 = vmatpush2.bf16.msra.mxu0 0
  %256 = vmatprep.subr.bf16.mxu0 0
  %257 = vmatpush2.bf16.msra.mxu0 0
  %258 = vmatprep.subr.bf16.mxu0 0
  %259 = vmatpush2.bf16.msra.mxu0 0
  %260 = vmatprep.mubr.bf16.mxu0 0
  %261 = vmatmul.mubr.bf16.gmra.mxu0 %v201
  %v262 = vpop.f32.mrf.mxu0
  %v263 = vadd.f32 %v82, %v262
  %v264 = vpop.f32.mrf.mxu0
  %v265 = vpop.f32.mrf.mxu0
  %v266 = vadd.f32 %v87, %v265
  %v267 = vpop.f32.mrf.mxu0
  %268 = vmatprep.mubr.bf16.mxu0 0
  %269 = vmatmul.mubr.bf16.gmra.mxu0 %v204
  %v270 = vpop.f32.mrf.mxu0
  %v271 = vadd.f32 %v92, %v270
  %v272 = vpop.f32.mrf.mxu0
  %v273 = vpop.f32.mrf.mxu0
  %v274 = vadd.f32 %v97, %v273
  %v275 = vpop.f32.mrf.mxu0
  %276 = vmatprep.mubr.bf16.mxu0 0
  %277 = vmatmul.mubr.bf16.gmra.mxu0 %v207
  %v278 = vpop.f32.mrf.mxu0
  %v279 = vadd.f32 %v102, %v278
  %v280 = vpop.f32.mrf.mxu0
  %v281 = vpop.f32.mrf.mxu0
  %v282 = vadd.f32 %v107, %v281
  %v283 = vpop.f32.mrf.mxu0
  %284 = vmatprep.mubr.bf16.mxu0 0
  %285 = vmatmul.mubr.bf16.gmra.mxu0 %v210
  %v286 = vpop.f32.mrf.mxu0
  %v287 = vadd.f32 %v112, %v286
  %v288 = vpop.f32.mrf.mxu0
  %v289 = vpop.f32.mrf.mxu0
  %v290 = vadd.f32 %v117, %v289
  %v291 = vpop.f32.mrf.mxu0
  %292 = vmatprep.mubr.bf16.mxu0 0
  %293 = vmatmul.mubr.bf16.gmra.mxu0 %v213
  %v294 = vpop.f32.mrf.mxu0
  %v295 = vadd.f32 %v122, %v294
  %v296 = vpop.f32.mrf.mxu0
  %v297 = vpop.f32.mrf.mxu0
  %v298 = vadd.f32 %v127, %v297
  %v299 = vpop.f32.mrf.mxu0
  %300 = vmatprep.mubr.bf16.mxu0 0
  %301 = vmatmul.mubr.bf16.gmra.mxu0 %v216
  %v302 = vpop.f32.mrf.mxu0
  %v303 = vadd.f32 %v132, %v302
  %v304 = vpop.f32.mrf.mxu0
  %v305 = vpop.f32.mrf.mxu0
  %v306 = vadd.f32 %v137, %v305
  %v307 = vpop.f32.mrf.mxu0
  %308 = vmatprep.mubr.bf16.mxu0 0
  %309 = vmatmul.mubr.bf16.gmra.mxu0 %v219
  %v310 = vpop.f32.mrf.mxu0
  %v311 = vadd.f32 %v142, %v310
  %v312 = vpop.f32.mrf.mxu0
  %v313 = vpop.f32.mrf.mxu0
  %v314 = vadd.f32 %v147, %v313
  %v315 = vpop.f32.mrf.mxu0
  %316 = vmatprep.mubr.bf16.mxu0 0
  %317 = vmatmul.mubr.bf16.gmra.mxu0 %v222
  %v318 = vpop.f32.mrf.mxu0
  %v319 = vadd.f32 %v152, %v318
  %v320 = vpop.f32.mrf.mxu0
  %v321 = vpop.f32.mrf.mxu0
  %v322 = vadd.f32 %v157, %v321
  %v323 = vpop.f32.mrf.mxu0
  %324 = vdwg.mxu0
  %v325 = vmax.f32 %v263, 0.0
  %v326 = vmax.f32 %v266, 0.0
  %v327 = vmax.f32 %v271, 0.0
  %v328 = vmax.f32 %v274, 0.0
  %v329 = vmax.f32 %v279, 0.0
  %v330 = vmax.f32 %v282, 0.0
  %v331 = vmax.f32 %v287, 0.0
  %v332 = vmax.f32 %v290, 0.0
  %v333 = vmax.f32 %v295, 0.0
  %v334 = vmax.f32 %v298, 0.0
  %v335 = vmax.f32 %v303, 0.0
  %v336 = vmax.f32 %v306, 0.0
  %v337 = vmax.f32 %v311, 0.0
  %v338 = vmax.f32 %v314, 0.0
  %v339 = vmax.f32 %v319, 0.0
  %v340 = vmax.f32 %v322, 0.0
  %v341 = vpack.c.bf16 %v326, %v325
  %v342 = vpack.c.bf16 %v328, %v327
  %v343 = vpack.c.bf16 %v330, %v329
  %v344 = vpack.c.bf16 %v332, %v331
  %v345 = vpack.c.bf16 %v334, %v333
  %v346 = vpack.c.bf16 %v336, %v335
  %v347 = vpack.c.bf16 %v338, %v337
  %v348 = vpack.c.bf16 %v340, %v339
  %v349 = vld [vmem:[%s4] sm:$0xf]
  %v350 = vld [vmem:[%s4 + $0x4] sm:$0xf]
  %v351 = vld [vmem:[%s4 + $0x8] sm:$0xf]
  %v352 = vld [vmem:[%s4 + $0xc] sm:$0xf]
  %v353 = vld [vmem:[%s4 + $0x10] sm:$0xf]
  %v354 = vld [vmem:[%s4 + $0x14] sm:$0xf]
  %v355 = vld [vmem:[%s4 + $0x18] sm:$0xf]
  %v356 = vld [vmem:[%s4 + $0x1c] sm:$0xf]
  %v357 = vld [vmem:[%s4 + $0x20] sm:$0xf]
  %v358 = vld [vmem:[%s4 + $0x24] sm:$0xf]
  %v359 = vld [vmem:[%s4 + $0x28] sm:$0xf]
  %v360 = vld [vmem:[%s4 + $0x2c] sm:$0xf]
  %v361 = vld [vmem:[%s4 + $0x30] sm:$0xf]
  %v362 = vld [vmem:[%s4 + $0x34] sm:$0xf]
  %v363 = vld [vmem:[%s4 + $0x38] sm:$0xf]
  %v364 = vld [vmem:[%s4 + $0x3c] sm:$0xf]
  %365 = vset.pattern.permute.xlu0 1
  %366 = vperm.xlu0 %365, %v63
  %v367 = vpop.permute.xlu0 %366
  %369 = vset.pattern.permute.xlu0 1
  %370 = vperm.xlu0 %369, %v64
  %v371 = vpop.permute.xlu0 %370
  %373 = vset.pattern.permute.xlu0 1
  %374 = vperm.xlu0 %373, %v65
  %v375 = vpop.permute.xlu0 %374
  %377 = vset.pattern.permute.xlu0 1
  %378 = vperm.xlu0 %377, %v66
  %v379 = vpop.permute.xlu0 %378
  %381 = vset.pattern.permute.xlu0 1
  %382 = vperm.xlu0 %381, %v67
  %v383 = vpop.permute.xlu0 %382
  %385 = vset.pattern.permute.xlu0 1
  %386 = vperm.xlu0 %385, %v68
  %v387 = vpop.permute.xlu0 %386
  %389 = vset.pattern.permute.xlu0 1
  %390 = vperm.xlu0 %389, %v69
  %v391 = vpop.permute.xlu0 %390
  %393 = vset.pattern.permute.xlu0 1
  %394 = vperm.xlu0 %393, %v70
  %v395 = vpop.permute.xlu0 %394
  %397 = vset.pattern.permute.xlu0 1
  %398 = vperm.xlu0 %397, %v71
  %v399 = vpop.permute.xlu0 %398
  %401 = vset.pattern.permute.xlu0 1
  %402 = vperm.xlu0 %401, %v72
  %v403 = vpop.permute.xlu0 %402
  %405 = vset.pattern.permute.xlu0 1
  %406 = vperm.xlu0 %405, %v73
  %v407 = vpop.permute.xlu0 %406
  %409 = vset.pattern.permute.xlu0 1
  %410 = vperm.xlu0 %409, %v74
  %v411 = vpop.permute.xlu0 %410
  %413 = vset.pattern.permute.xlu0 1
  %414 = vperm.xlu0 %413, %v75
  %v415 = vpop.permute.xlu0 %414
  %417 = vset.pattern.permute.xlu0 1
  %418 = vperm.xlu0 %417, %v76
  %v419 = vpop.permute.xlu0 %418
  %421 = vset.pattern.permute.xlu0 1
  %422 = vperm.xlu0 %421, %v77
  %v423 = vpop.permute.xlu0 %422
  %425 = vset.pattern.permute.xlu0 1
  %426 = vperm.xlu0 %425, %v78
  %v427 = vpop.permute.xlu0 %426
  %v445 = vunpack.c.l.b16 %v349
  %v446 = vunpack.c.l.b16 %v350
  %v447 = vunpack.c.l.b16 %v351
  %v448 = vunpack.c.l.b16 %v352
  %v449 = vunpack.c.l.b16 %v353
  %v450 = vunpack.c.l.b16 %v354
  %v451 = vunpack.c.l.b16 %v355
  %v452 = vunpack.c.l.b16 %v356
  %v453 = vunpack.c.l.b16 %v357
  %v454 = vunpack.c.l.b16 %v358
  %v455 = vunpack.c.l.b16 %v359
  %v456 = vunpack.c.l.b16 %v360
  %v457 = vunpack.c.l.b16 %v361
  %v458 = vunpack.c.l.b16 %v362
  %v459 = vunpack.c.l.b16 %v363
  %v460 = vunpack.c.l.b16 %v364
  %v461 = vpack.c.b16 %v446, %v445
  %v462 = vpack.c.b16 %v448, %v447
  %v463 = vpack.c.b16 %v450, %v449
  %v464 = vpack.c.b16 %v452, %v451
  %v465 = vpack.c.b16 %v454, %v453
  %v466 = vpack.c.b16 %v456, %v455
  %v467 = vpack.c.b16 %v458, %v457
  %v468 = vpack.c.b16 %v460, %v459
  %477 = vmatprep.subr.bf16.mxu0 0
  %478 = vmatpush1.bf16.msra.mxu0 %v348
  %479 = vmatprep.subr.bf16.mxu0 0
  %480 = vmatpush1.bf16.msra.mxu0 %v347
  %481 = vmatprep.subr.bf16.mxu0 0
  %482 = vmatpush1.bf16.msra.mxu0 %v346
  %483 = vmatprep.subr.bf16.mxu0 0
  %484 = vmatpush1.bf16.msra.mxu0 %v345
  %485 = vmatprep.subr.bf16.mxu0 0
  %486 = vmatpush1.bf16.msra.mxu0 %v344
  %487 = vmatprep.subr.bf16.mxu0 0
  %488 = vmatpush1.bf16.msra.mxu0 %v343
  %489 = vmatprep.subr.bf16.mxu0 0
  %490 = vmatpush1.bf16.msra.mxu0 %v342
  %491 = vmatprep.subr.bf16.mxu0 0
  %492 = vmatpush1.bf16.msra.mxu0 %v341
  %493 = vmatprep.subr.bf16.mxu0 0
  %494 = vmatpush2.bf16.msra.mxu0 0
  %495 = vmatprep.subr.bf16.mxu0 0
  %496 = vmatpush2.bf16.msra.mxu0 0
  %497 = vmatprep.subr.bf16.mxu0 0
  %498 = vmatpush2.bf16.msra.mxu0 0
  %499 = vmatprep.subr.bf16.mxu0 0
  %500 = vmatpush2.bf16.msra.mxu0 0
  %501 = vmatprep.subr.bf16.mxu0 0
  %502 = vmatpush2.bf16.msra.mxu0 0
  %503 = vmatprep.subr.bf16.mxu0 0
  %504 = vmatpush2.bf16.msra.mxu0 0
  %505 = vmatprep.subr.bf16.mxu0 0
  %506 = vmatpush2.bf16.msra.mxu0 0
  %507 = vmatprep.subr.bf16.mxu0 0
  %508 = vmatpush2.bf16.msra.mxu0 0
  %509 = vmatprep.mubr.bf16.mxu0 0
  %510 = vmatmul.mubr.bf16.gmra.mxu0 %v461
  %v511 = vpop.f32.mrf.mxu0
  %v512 = vadd.f32 %v367, %v511
  %v513 = vpop.f32.mrf.mxu0
  %v514 = vpop.f32.mrf.mxu0
  %v515 = vadd.f32 %v371, %v514
  %v516 = vpop.f32.mrf.mxu0
  %517 = vmatprep.mubr.bf16.mxu0 0
  %518 = vmatmul.mubr.bf16.gmra.mxu0 %v462
  %v519 = vpop.f32.mrf.mxu0
  %v520 = vadd.f32 %v375, %v519
  %v521 = vpop.f32.mrf.mxu0
  %v522 = vpop.f32.mrf.mxu0
  %v523 = vadd.f32 %v379, %v522
  %v524 = vpop.f32.mrf.mxu0
  %525 = vmatprep.mubr.bf16.mxu0 0
  %526 = vmatmul.mubr.bf16.gmra.mxu0 %v463
  %v527 = vpop.f32.mrf.mxu0
  %v528 = vadd.f32 %v383, %v527
  %v529 = vpop.f32.mrf.mxu0
  %v530 = vpop.f32.mrf.mxu0
  %v531 = vadd.f32 %v387, %v530
  %v532 = vpop.f32.mrf.mxu0
  %533 = vmatprep.mubr.bf16.mxu0 0
  %534 = vmatmul.mubr.bf16.gmra.mxu0 %v464
  %v535 = vpop.f32.mrf.mxu0
  %v536 = vadd.f32 %v391, %v535
  %v537 = vpop.f32.mrf.mxu0
  %v538 = vpop.f32.mrf.mxu0
  %v539 = vadd.f32 %v395, %v538
  %v540 = vpop.f32.mrf.mxu0
  %541 = vmatprep.mubr.bf16.mxu0 0
  %542 = vmatmul.mubr.bf16.gmra.mxu0 %v465
  %v543 = vpop.f32.mrf.mxu0
  %v544 = vadd.f32 %v399, %v543
  %v545 = vpop.f32.mrf.mxu0
  %v546 = vpop.f32.mrf.mxu0
  %v547 = vadd.f32 %v403, %v546
  %v548 = vpop.f32.mrf.mxu0
  %549 = vmatprep.mubr.bf16.mxu0 0
  %550 = vmatmul.mubr.bf16.gmra.mxu0 %v466
  %v551 = vpop.f32.mrf.mxu0
  %v552 = vadd.f32 %v407, %v551
  %v553 = vpop.f32.mrf.mxu0
  %v554 = vpop.f32.mrf.mxu0
  %v555 = vadd.f32 %v411, %v554
  %v556 = vpop.f32.mrf.mxu0
  %557 = vmatprep.mubr.bf16.mxu0 0
  %558 = vmatmul.mubr.bf16.gmra.mxu0 %v467
  %v559 = vpop.f32.mrf.mxu0
  %v560 = vadd.f32 %v415, %v559
  %v561 = vpop.f32.mrf.mxu0
  %v562 = vpop.f32.mrf.mxu0
  %v563 = vadd.f32 %v419, %v562
  %v564 = vpop.f32.mrf.mxu0
  %565 = vmatprep.mubr.bf16.mxu0 0
  %566 = vmatmul.mubr.bf16.gmra.mxu0 %v468
  %v567 = vpop.f32.mrf.mxu0
  %v568 = vadd.f32 %v423, %v567
  %v569 = vpop.f32.mrf.mxu0
  %v570 = vpop.f32.mrf.mxu0
  %v571 = vadd.f32 %v427, %v570
  %v572 = vpop.f32.mrf.mxu0
  %573 = vdwg.mxu0
  %v574 = vtanh.pop %v512
  %v575 = vtanh.pop %v515
  %v576 = vtanh.pop %v520
  %v577 = vtanh.pop %v523
  %v578 = vtanh.pop %v528
  %v579 = vtanh.pop %v531
  %v580 = vtanh.pop %v536
  %v581 = vtanh.pop %v539
  %v582 = vtanh.pop %v544
  %v583 = vtanh.pop %v547
  %v584 = vtanh.pop %v552
  %v585 = vtanh.pop %v555
  %v586 = vtanh.pop %v560
  %v587 = vtanh.pop %v563
  %v588 = vtanh.pop %v568
  %v589 = vtanh.pop %v571
  %v590 = vpack.c.bf16 %v575, %v574
  %v591 = vpack.c.bf16 %v577, %v576
  %v592 = vpack.c.bf16 %v579, %v578
  %v593 = vpack.c.bf16 %v581, %v580
  %v594 = vpack.c.bf16 %v583, %v582
  %v595 = vpack.c.bf16 %v585, %v584
  %v596 = vpack.c.bf16 %v587, %v586
  %v597 = vpack.c.bf16 %v589, %v588
  %v598 = vld [vmem:[%s5] sm:$0x1]
  %s599 = sld [smem:[#allocation2]]
  %v600 = vstv %s599
  %601 = vmatprep.subr.bf16.mxu0 0
  %602 = vmatpush1.bf16.msra.mxu0 %v597
  %603 = vmatprep.subr.bf16.mxu0 0
  %604 = vmatpush1.bf16.msra.mxu0 %v596
  %605 = vmatprep.subr.bf16.mxu0 0
  %606 = vmatpush1.bf16.msra.mxu0 %v595
  %607 = vmatprep.subr.bf16.mxu0 0
  %608 = vmatpush1.bf16.msra.mxu0 %v594
  %609 = vmatprep.subr.bf16.mxu0 0
  %610 = vmatpush1.bf16.msra.mxu0 %v593
  %611 = vmatprep.subr.bf16.mxu0 0
  %612 = vmatpush1.bf16.msra.mxu0 %v592
  %613 = vmatprep.subr.bf16.mxu0 0
  %614 = vmatpush1.bf16.msra.mxu0 %v591
  %615 = vmatprep.subr.bf16.mxu0 0
  %616 = vmatpush1.bf16.msra.mxu0 %v590
  %617 = vmatprep.subr.bf16.mxu0 0
  %618 = vmatpush2.bf16.msra.mxu0 0
  %619 = vmatprep.subr.bf16.mxu0 0
  %620 = vmatpush2.bf16.msra.mxu0 0
  %621 = vmatprep.subr.bf16.mxu0 0
  %622 = vmatpush2.bf16.msra.mxu0 0
  %623 = vmatprep.subr.bf16.mxu0 0
  %624 = vmatpush2.bf16.msra.mxu0 0
  %625 = vmatprep.subr.bf16.mxu0 0
  %626 = vmatpush2.bf16.msra.mxu0 0
  %627 = vmatprep.subr.bf16.mxu0 0
  %628 = vmatpush2.bf16.msra.mxu0 0
  %629 = vmatprep.subr.bf16.mxu0 0
  %630 = vmatpush2.bf16.msra.mxu0 0
  %631 = vmatprep.subr.bf16.mxu0 0
  %632 = vmatpush2.bf16.msra.mxu0 0
  %633 = vmatprep.mubr.bf16.mxu0 0
  %634 = vmatmul.mubr.bf16.gmra.mxu0 %v598
  %v635 = vpop.f32.mrf.mxu0
  %v636 = vadd.f32 %v600, %v635
  %v637 = vpop.f32.mrf.mxu0
  %v638 = vpop.f32.mrf.mxu0
  %v639 = vpop.f32.mrf.mxu0
  %640 = vdwg.mxu0
  %641 = vst [vmem:[%s7] sm:$0x1] %v636
  // Predicated region
  $region30: #{reward_predictor_forward.1} parent=0 // pred_check
    _
  $region31: #{reward_predictor_forward.1} parent=0 // pred_check_branch
    %643 = sbr.rel (0) target = $region33
  $region32: #{reward_predictor_forward.1} parent=0 // pred_region
    _
  $region33: #{reward_predictor_forward.1} parent=0 // pred_fallthru
    _
  // Predicated region
  $region34: #{reward_predictor_forward.1} parent=0 // pred_check
    _
  $region35: #{reward_predictor_forward.1} parent=0 // pred_check_branch
    %645 = sbr.rel (0) target = $region37
  $region36: #{reward_predictor_forward.1} parent=0 // pred_region
    _
  $region37: #{reward_predictor_forward.1} parent=0 // pred_fallthru
    _

</llo_original>
